<compile_context>
chip_gen: v5e
topology: v5e:2x2
jax: 0.10.0
libtpu: 0.0.40
codegen_flags: <defaults>
</compile_context>

<pallas_src>
import functools

import jax
import jax.numpy as jnp
from jax import lax
from jax.experimental import pallas as pl
from jax.experimental.pallas import tpu as pltpu


_SQRT_HALF = 0.7071067811865476  # 1/sqrt(2)


def _round_up(x, mult):
    return ((x + mult - 1) // mult) * mult


def _cdiv(a, b):
    return -(-a // b)


def _detect_vmem_bytes():
    """Best-effort per-TensorCore VMEM capacity (falls back to v7x's 64 MiB,
    the most conservative value, so chosen tiles are always schedulable)."""
    try:
        info = pltpu.get_tpu_info()
        for name in ("vmem_capacity_bytes", "vmem_bytes", "vmem_size_bytes"):
            v = getattr(info, name, None)
            if v:
                return int(v)
    except Exception:
        pass
    return 64 * 1024 * 1024


_VMEM_BYTES = _detect_vmem_bytes()


def _gelu_exact(h):
    # torch.nn.GELU() default: 0.5 * x * (1 + erf(x / sqrt(2))).
    # TODO(synk): optional tanh/bf16 GELU (EUP path) on v6e/v7x if numerics allow.
    return 0.5 * h * (1.0 + lax.erf(h * _SQRT_HALF))


# ---------------------------------------------------------------------------
# Kernels
# ---------------------------------------------------------------------------
def _mlp_kernel_resident(x_ref, w1_ref, b1_ref, w2_ref, b2_ref, o_ref):
    """Whole hidden dim in one shot; weight blocks are grid-invariant so they
    stay resident in VMEM (fetched from HBM exactly once)."""
    h = jnp.dot(x_ref[...], w1_ref[...], preferred_element_type=jnp.float32)
    h = h + b1_ref[...].astype(jnp.float32)
    h = _gelu_exact(h)
    # Dropout(p=0.0) is the identity -> nothing to do.
    # TODO(synk): dropout with p > 0 (training) would need pltpu.prng_* masking.
    out = jnp.dot(h.astype(w2_ref.dtype), w2_ref[...],
                  preferred_element_type=jnp.float32)
    o_ref[...] = (out + b2_ref[...].astype(jnp.float32)).astype(o_ref.dtype)


def _mlp_kernel_tiled_f32out(x_ref, w1_ref, b1_ref, w2_ref, b2_ref, o_ref):
    """Hidden dim tiled; the f32 output tile doubles as the accumulator
    (resident across k), so no extra VMEM scratch or finalize copy."""
    k = pl.program_id(1)

    @pl.when(k == 0)
    def _init():
        o_ref[...] = jnp.zeros_like(o_ref)

    h = jnp.dot(x_ref[...], w1_ref[...], preferred_element_type=jnp.float32)
    h = h + b1_ref[...].astype(jnp.float32)
    h = _gelu_exact(h)
    o_ref[...] += jnp.dot(h.astype(w2_ref.dtype), w2_ref[...],
                          preferred_element_type=jnp.float32)

    @pl.when(k == pl.num_programs(1) - 1)
    def _finalize():
        o_ref[...] += b2_ref[...].astype(jnp.float32)


def _mlp_kernel_tiled_scratch(x_ref, w1_ref, b1_ref, w2_ref, b2_ref, o_ref,
                              acc_ref):
    """Hidden dim tiled; f32 scratch accumulator (for non-f32 output dtypes)."""
    k = pl.program_id(1)

    @pl.when(k == 0)
    def _init():
        acc_ref[...] = jnp.zeros_like(acc_ref)

    h = jnp.dot(x_ref[...], w1_ref[...], preferred_element_type=jnp.float32)
    h = h + b1_ref[...].astype(jnp.float32)
    h = _gelu_exact(h)
    acc_ref[...] += jnp.dot(h.astype(w2_ref.dtype), w2_ref[...],
                            preferred_element_type=jnp.float32)

    @pl.when(k == pl.num_programs(1) - 1)
    def _finalize():
        o_ref[...] = (acc_ref[...] + b2_ref[...].astype(jnp.float32)
                      ).astype(o_ref.dtype)


# ---------------------------------------------------------------------------
# Wrapper
# ---------------------------------------------------------------------------
@functools.partial(jax.jit, static_argnames=("tm", "tk_h"))
def mlp_pallas(x, w1, b1, w2, b2, *, tm=None, tk_h=None):
    """x: (..., C_in). Weights stored as (C_in, C_hid), (C_hid, C_out).

    Returns (..., C_out).
    """
    orig_shape = x.shape
    c_in = orig_shape[-1]
    x2d = x.reshape(-1, c_in)
    m = x2d.shape[0]
    c_hid = w1.shape[1]
    c_out = w2.shape[1]

    x_itemsize = jnp.dtype(x.dtype).itemsize
    w_itemsize = jnp.dtype(w1.dtype).itemsize
    out_is_f32 = jnp.dtype(x.dtype) == jnp.dtype(jnp.float32)

    vmem_bytes = _VMEM_BYTES
    budget = int(vmem_bytes * 0.7)  # headroom for Mosaic internal scratch etc.

    # ---- padded feature dims ----------------------------------------------
    # c_out padded to 256: lane-dense unmasked stores + full-width 256 MXU N
    # edge on v6e/v7x (also fine on v5e).  Zero padding is exactly
    # correctness-preserving (GELU(0)=0; zero weight rows/cols contribute 0).
    c_out_pad = _round_up(c_out, 256)
    c_hid_128 = _round_up(c_hid, 128)
    # NOTE: c_in is intentionally NOT padded -> no wrapper-side HBM copy of x.

    # ---- row tile -----------------------------------------------------------
    # x is never padded along M: Pallas masks the ragged last block (rows are
    # independent).  Aim for >= 2 M tiles when M is big enough so the
    # "parallel" axis shards across both TensorCores on v7x.
    if tm is None:
        if m >= 1024:
            tm = 512
        elif m >= 256:
            tm = min(512, _round_up(_cdiv(m, 2), 8))
        else:
            tm = _round_up(max(m, 1), 8)

    # ---- resident-weights vs hidden-tiled decision --------------------------
    weight_bytes = (c_in * c_hid_128 + c_hid_128
                    + c_hid_128 * c_out_pad + c_out_pad) * w_itemsize

    def resident_vmem(tm_):
        return (2 * tm_ * c_in * x_itemsize            # x tile (double-buffered)
                + 2 * weight_bytes                     # weights (worst-case 2x)
                + 2 * tm_ * c_out_pad * x_itemsize     # output tile
                + tm_ * c_hid_128 * 4)                 # f32 GELU intermediate

    resident = (tk_h is None) and (weight_bytes <= vmem_bytes // 4)
    if resident:
        tm_r = tm
        while tm_r > 64 and resident_vmem(tm_r) > budget:
            tm_r = max(64, _round_up(tm_r // 2, 8))
        if resident_vmem(tm_r) > budget:
            resident = False
        else:
            tm = tm_r

    if resident:
        c_hid_pad = c_hid_128
        n_k = 1
        vmem_est = resident_vmem(tm)
    else:
        # Hidden chunk sized to the detected VMEM (per review: 1024 on 64 MiB
        # v7x, 2048 on 128 MiB v5e/v6e), picked to minimize hidden padding.
        max_tk = 2048 if vmem_bytes >= (96 << 20) else 1024
        if tk_h is None:
            n_chunks = _cdiv(c_hid_128, max_tk)
            tk_h = _round_up(_cdiv(c_hid_128, n_chunks), 128)
        else:
            tk_h = _round_up(tk_h, 128)

        def tiled_vmem(tm_, tk_):
            est = (2 * tm_ * c_in * x_itemsize
                   + 2 * c_in * tk_ * w_itemsize + 2 * tk_ * w_itemsize
                   + 2 * tk_ * c_out_pad * w_itemsize + 2 * c_out_pad * w_itemsize
                   + 2 * tm_ * c_out_pad * (4 if out_is_f32 else x_itemsize)
                   + tm_ * tk_ * 4)                    # f32 GELU intermediate
            if not out_is_f32:
                est += tm_ * c_out_pad * 4             # f32 scratch accumulator
            return est

        # TODO(synk): add an N (c_out) grid axis when c_out_pad is very large
        # (> ~2048 on v7x) instead of only shrinking tm/tk_h.
        while tiled_vmem(tm, tk_h) > budget and (tm > 64 or tk_h > 128):
            if tk_h > 128 and tk_h >= tm:
                tk_h = max(128, _round_up(tk_h // 2, 128))
            else:
                tm = max(64, _round_up(tm // 2, 8))

        c_hid_pad = _round_up(c_hid_128, tk_h)
        n_k = c_hid_pad // tk_h
        vmem_est = tiled_vmem(tm, tk_h)

    n_m_tiles = _cdiv(m, tm)

    # ---- zero-pad weights / biases to tile multiples ------------------------
    w1p = w1
    b1p = b1.reshape(1, c_hid)
    w2p = w2
    b2p = b2.reshape(1, c_out)
    if c_hid_pad != c_hid:
        w1p = jnp.pad(w1p, ((0, 0), (0, c_hid_pad - c_hid)))
        b1p = jnp.pad(b1p, ((0, 0), (0, c_hid_pad - c_hid)))
        w2p = jnp.pad(w2p, ((0, c_hid_pad - c_hid), (0, 0)))
    if c_out_pad != c_out:
        w2p = jnp.pad(w2p, ((0, 0), (0, c_out_pad - c_out)))
        b2p = jnp.pad(b2p, ((0, 0), (0, c_out_pad - c_out)))

    # ---- compiler VMEM limit (never above 3/4 of physical) ------------------
    vmem_limit = int(min(vmem_bytes * 3 // 4,
                         max(32 << 20, vmem_est * 5 // 4)))

    # ---- advisory cost estimate ---------------------------------------------
    m_eff = n_m_tiles * tm
    weight_hbm_bytes = (c_in * c_hid_pad + c_hid_pad
                        + c_hid_pad * c_out_pad + c_out_pad) * w_itemsize
    w_stream = 1 if (resident or n_k == 1) else n_m_tiles
    flops = 2 * m_eff * c_in * c_hid_pad + 2 * m_eff * c_hid_pad * c_out_pad
    bytes_accessed = ((m * c_in + m * c_out_pad) * x_itemsize
                      + w_stream * weight_hbm_bytes)
    cost = pl.CostEstimate(flops=int(flops),
                           transcendentals=int(m_eff * c_hid_pad),
                           bytes_accessed=int(bytes_accessed))

    # ---- launch --------------------------------------------------------------
    if resident:
        out2d = pl.pallas_call(
            _mlp_kernel_resident,
            out_shape=jax.ShapeDtypeStruct((m, c_out_pad), x.dtype),
            grid_spec=pltpu.PrefetchScalarGridSpec(
                num_scalar_prefetch=0,
                grid=(n_m_tiles,),
                in_specs=[
                    pl.BlockSpec((tm, c_in), lambda i: (i, 0)),            # x
                    pl.BlockSpec((c_in, c_hid_pad), lambda i: (0, 0)),     # W1
                    pl.BlockSpec((1, c_hid_pad), lambda i: (0, 0)),        # b1
                    pl.BlockSpec((c_hid_pad, c_out_pad), lambda i: (0, 0)),  # W2
                    pl.BlockSpec((1, c_out_pad), lambda i: (0, 0)),        # b2
                ],
                out_specs=pl.BlockSpec((tm, c_out_pad), lambda i: (i, 0)),
            ),
            compiler_params=pltpu.CompilerParams(
                dimension_semantics=("parallel",),
                vmem_limit_bytes=vmem_limit,
            ),
            cost_estimate=cost,
        )(x2d, w1p, b1p, w2p, b2p)
    else:
        kernel = (_mlp_kernel_tiled_f32out if out_is_f32
                  else _mlp_kernel_tiled_scratch)
        scratch = ([] if out_is_f32
                   else [pltpu.VMEM((tm, c_out_pad), jnp.float32)])
        out2d = pl.pallas_call(
            kernel,
            out_shape=jax.ShapeDtypeStruct((m, c_out_pad), x.dtype),
            grid_spec=pltpu.PrefetchScalarGridSpec(
                num_scalar_prefetch=0,
                grid=(n_m_tiles, n_k),
                in_specs=[
                    pl.BlockSpec((tm, c_in), lambda i, k: (i, 0)),         # x
                    pl.BlockSpec((c_in, tk_h), lambda i, k: (0, k)),       # W1
                    pl.BlockSpec((1, tk_h), lambda i, k: (0, k)),          # b1
                    pl.BlockSpec((tk_h, c_out_pad), lambda i, k: (k, 0)),  # W2
                    pl.BlockSpec((1, c_out_pad), lambda i, k: (0, 0)),     # b2
                ],
                out_specs=pl.BlockSpec((tm, c_out_pad), lambda i, k: (i, 0)),
                scratch_shapes=scratch,
            ),
            compiler_params=pltpu.CompilerParams(
                dimension_semantics=("parallel", "arbitrary"),
                vmem_limit_bytes=vmem_limit,
            ),
            cost_estimate=cost,
        )(x2d, w1p, b1p, w2p, b2p)

    if c_out_pad != c_out:
        out2d = out2d[:, :c_out]
    return out2d.reshape(*orig_shape[:-1], c_out)


# ---------------------------------------------------------------------------
# Params / reference
# ---------------------------------------------------------------------------
def init_mlp_params(key, in_features, hidden_features, out_features,
                    dtype=jnp.float32):
    """Deterministic init mimicking nn.Linear defaults (kaiming-uniform-ish)."""
    k1, k2, k3, k4 = jax.random.split(key, 4)
    bound1 = 1.0 / jnp.sqrt(in_features)
    bound2 = 1.0 / jnp.sqrt(hidden_features)
    # stored as (in, out) = transpose of torch's (out, in)
    w1 = jax.random.uniform(k1, (in_features, hidden_features),
                            minval=-bound1, maxval=bound1, dtype=dtype)
    b1 = jax.random.uniform(k2, (hidden_features,),
                            minval=-bound1, maxval=bound1, dtype=dtype)
    w2 = jax.random.uniform(k3, (hidden_features, out_features),
                            minval=-bound2, maxval=bound2, dtype=dtype)
    b2 = jax.random.uniform(k4, (out_features,),
                            minval=-bound2, maxval=bound2, dtype=dtype)
    return w1, b1, w2, b2


def mlp_reference(x, w1, b1, w2, b2):
    h = x @ w1 + b1
    h = 0.5 * h * (1.0 + lax.erf(h / jnp.sqrt(2.0)))
    return h @ w2 + b2


if __name__ == "__main__":
    key = jax.random.PRNGKey(0)
    kx, kp = jax.random.split(key)

    # Small shapes consistent with the module: tokens (B, N, C_in)
    B, N = 2, 8
    in_features, hidden_features, out_features = 32, 64, 32

    x = jax.random.normal(kx, (B, N, in_features), dtype=jnp.float32)
    w1, b1, w2, b2 = init_mlp_params(kp, in_features, hidden_features,
                                     out_features)

    out = mlp_pallas(x, w1, b1, w2, b2)
    out = jax.block_until_ready(out)

    ref = mlp_reference(x, w1, b1, w2, b2)
    assert out.shape == (B, N, out_features)
    assert jnp.allclose(out, ref, atol=1e-4, rtol=1e-4), "mismatch vs reference"

    print("KERNEL_OK")
</pallas_src>

<mosaic_0001>
module attributes {stable_mosaic.version = 11 : i64} {
  func.func @_mlp_kernel_resident(%arg0: i32, %arg1: memref<16x32xf32, #tpu.memory_space<vmem>>, %arg2: memref<32x128xf32, #tpu.memory_space<vmem>>, %arg3: memref<1x128xf32, #tpu.memory_space<vmem>>, %arg4: memref<128x256xf32, #tpu.memory_space<vmem>>, %arg5: memref<1x256xf32, #tpu.memory_space<vmem>>, %arg6: memref<16x256xf32, #tpu.memory_space<vmem>>) attributes {dimension_semantics = [#tpu.dimension_semantics<parallel>], iteration_bounds = array<i64: 1>, scalar_prefetch = 0 : i64, scratch_operands = 0 : i64, tpu.core_type = #tpu.core_type<tc>, window_params = [{transform_indices = @transform_0, window_bounds = array<i64: 16, 32>}, {pipeline_mode = #tpu.pipeline_mode<synchronous>, transform_indices = @transform_1, window_bounds = array<i64: 32, 128>}, {pipeline_mode = #tpu.pipeline_mode<synchronous>, transform_indices = @transform_2, window_bounds = array<i64: 1, 128>}, {pipeline_mode = #tpu.pipeline_mode<synchronous>, transform_indices = @transform_3, window_bounds = array<i64: 128, 256>}, {pipeline_mode = #tpu.pipeline_mode<synchronous>, transform_indices = @transform_4, window_bounds = array<i64: 1, 256>}, {transform_indices = @transform_5, window_bounds = array<i64: 16, 256>}]} {
    %c0 = arith.constant 0 : index
    %c0_0 = arith.constant 0 : index
    %0 = vector.load %arg1[%c0, %c0_0] : memref<16x32xf32, #tpu.memory_space<vmem>>, vector<16x32xf32>
    %c0_1 = arith.constant 0 : index
    %c0_2 = arith.constant 0 : index
    %1 = vector.load %arg2[%c0_1, %c0_2] : memref<32x128xf32, #tpu.memory_space<vmem>>, vector<32x128xf32>
    %cst = arith.constant dense<0.000000e+00> : vector<16x128xf32>
    %2 = tpu.matmul %0, %1, %cst {dimension_numbers = #tpu.dot_dimension_numbers<[1], [0], [0], [1], [0, 0, 1, 1], [], []>} : vector<16x32xf32>, vector<32x128xf32>, vector<16x128xf32> -> vector<16x128xf32>
    %c0_3 = arith.constant 0 : index
    %c0_4 = arith.constant 0 : index
    %3 = vector.load %arg3[%c0_3, %c0_4] : memref<1x128xf32, #tpu.memory_space<vmem>>, vector<1x128xf32>
    %4 = vector.broadcast %3 : vector<1x128xf32> to vector<16x128xf32>
    %5 = arith.addf %2, %4 : vector<16x128xf32>
    %cst_5 = arith.constant 5.000000e-01 : f32
    %6 = vector.broadcast %cst_5 : f32 to vector<16x128xf32>
    %7 = arith.mulf %6, %5 : vector<16x128xf32>
    %cst_6 = arith.constant 0.707106769 : f32
    %8 = vector.broadcast %cst_6 : f32 to vector<16x128xf32>
    %9 = arith.mulf %5, %8 : vector<16x128xf32>
    %10 = math.erf %9 : vector<16x128xf32>
    %cst_7 = arith.constant 1.000000e+00 : f32
    %11 = vector.broadcast %cst_7 : f32 to vector<16x128xf32>
    %12 = arith.addf %11, %10 : vector<16x128xf32>
    %13 = arith.mulf %7, %12 : vector<16x128xf32>
    %c0_8 = arith.constant 0 : index
    %c0_9 = arith.constant 0 : index
    %14 = vector.load %arg4[%c0_8, %c0_9] : memref<128x256xf32, #tpu.memory_space<vmem>>, vector<128x256xf32>
    %cst_10 = arith.constant dense<0.000000e+00> : vector<16x256xf32>
    %15 = tpu.matmul %13, %14, %cst_10 {dimension_numbers = #tpu.dot_dimension_numbers<[1], [0], [0], [1], [0, 0, 1, 1], [], []>} : vector<16x128xf32>, vector<128x256xf32>, vector<16x256xf32> -> vector<16x256xf32>
    %c0_11 = arith.constant 0 : index
    %c0_12 = arith.constant 0 : index
    %16 = vector.load %arg5[%c0_11, %c0_12] : memref<1x256xf32, #tpu.memory_space<vmem>>, vector<1x256xf32>
    %17 = vector.broadcast %16 : vector<1x256xf32> to vector<16x256xf32>
    %18 = arith.addf %15, %17 : vector<16x256xf32>
    %c0_13 = arith.constant 0 : index
    %c0_14 = arith.constant 0 : index
    %19 = vector.load %arg6[%c0_13, %c0_14] : memref<16x256xf32, #tpu.memory_space<vmem>>, vector<16x256xf32>
    tpu.vector_store %arg6[%c0_13, %c0_14], %18 {strides = array<i32>} : memref<16x256xf32, #tpu.memory_space<vmem>>, vector<16x256xf32>,
    return
  }
  func.func @transform_0(%arg0: i32) -> (i32, i32) {
    %c0_i32 = arith.constant 0 : i32
    %c0_i32_0 = arith.constant 0 : i32
    return %arg0, %c0_i32 : i32, i32
  }
  func.func @transform_1(%arg0: i32) -> (i32, i32) {
    %c0_i32 = arith.constant 0 : i32
    %c0_i32_0 = arith.constant 0 : i32
    %c0_i32_1 = arith.constant 0 : i32
    return %c0_i32, %c0_i32_0 : i32, i32
  }
  func.func @transform_2(%arg0: i32) -> (i32, i32) {
    %c0_i32 = arith.constant 0 : i32
    %c0_i32_0 = arith.constant 0 : i32
    %c0_i32_1 = arith.constant 0 : i32
    return %c0_i32, %c0_i32_0 : i32, i32
  }
  func.func @transform_3(%arg0: i32) -> (i32, i32) {
    %c0_i32 = arith.constant 0 : i32
    %c0_i32_0 = arith.constant 0 : i32
    %c0_i32_1 = arith.constant 0 : i32
    return %c0_i32, %c0_i32_0 : i32, i32
  }
  func.func @transform_4(%arg0: i32) -> (i32, i32) {
    %c0_i32 = arith.constant 0 : i32
    %c0_i32_0 = arith.constant 0 : i32
    %c0_i32_1 = arith.constant 0 : i32
    return %c0_i32, %c0_i32_0 : i32, i32
  }
  func.func @transform_5(%arg0: i32) -> (i32, i32) {
    %c0_i32 = arith.constant 0 : i32
    %c0_i32_0 = arith.constant 0 : i32
    return %arg0, %c0_i32 : i32, i32
  }
}

</mosaic_0001>

<llo_original>
// kernel: mlp_pallas.1
$region0: #{mlp_pallas.1}
  #allocation0 [shape = 'u32[]', space=smem, size = 0x4, offset = 0x4, fixed_abs, tag = 'smem constant byte address 0x4 - core index']
  #allocation1 [shape = 'u32[72,128]{1,0:T(1,128)}', space=vmem, size = 0x9000, scoped, tag = 'internal scratch']
  %s0 = inlined_call_operand.vmem [shape: f32[16,32], index: 0, kind: input, shape index: {}]
  %s1 = inlined_call_operand.vmem [shape: f32[32,128], index: 1, kind: input, shape index: {}]
  %s2 = inlined_call_operand.vmem [shape: f32[1,128], index: 2, kind: input, shape index: {}]
  %s3 = inlined_call_operand.vmem [shape: f32[128,256], index: 3, kind: input, shape index: {}]
  %s4 = inlined_call_operand.vmem [shape: f32[1,256], index: 4, kind: input, shape index: {}]
  %s5 = inlined_call_operand.vmem [shape: f32[16,256], index: 5, kind: output, shape index: {}]
  %s6 = sld [smem:[#allocation0]]
  $region30: #{mlp_pallas.1} parent=0
    _
  %s8 = ssub.s32 1, %s6
  %s9 = scalar_select 0, %s8, %s6
  // Predicated region
  $region2: #{mlp_pallas.1} parent=0 // pred_check
    _
  $region3: #{mlp_pallas.1} parent=0 // pred_check_branch
    %11 = sbr.rel (0) target = $region5
  $region4: #{mlp_pallas.1} parent=0 // pred_region
    _
  $region5: #{mlp_pallas.1} parent=0 // pred_fallthru
    _
  // Predicated region
  $region6: #{mlp_pallas.1} parent=0 // pred_check
    _
  $region7: #{mlp_pallas.1} parent=0 // pred_check_branch
    %13 = sbr.rel (0) target = $region9
  $region8: #{mlp_pallas.1} parent=0 // pred_region
    _
  $region9: #{mlp_pallas.1} parent=0 // pred_fallthru
    _
  // Predicated region
  $region10: #{mlp_pallas.1} parent=0 // pred_check
    _
  $region11: #{mlp_pallas.1} parent=0 // pred_check_branch
    %15 = sbr.rel (0) target = $region13
  $region12: #{mlp_pallas.1} parent=0 // pred_region
    _
  $region13: #{mlp_pallas.1} parent=0 // pred_fallthru
    _
  // Predicated region
  $region14: #{mlp_pallas.1} parent=0 // pred_check
    _
  $region15: #{mlp_pallas.1} parent=0 // pred_check_branch
    %17 = sbr.rel (0) target = $region17
  $region16: #{mlp_pallas.1} parent=0 // pred_region
    _
  $region17: #{mlp_pallas.1} parent=0 // pred_fallthru
    _
  // Predicated region
  $region18: #{mlp_pallas.1} parent=0 // pred_check
    _
  $region19: #{mlp_pallas.1} parent=0 // pred_check_branch
    %19 = sbr.rel (0) target = $region21
  $region20: #{mlp_pallas.1} parent=0 // pred_region
    _
  $region21: #{mlp_pallas.1} parent=0 // pred_fallthru
    _
  %v20 = vld [vmem:[%s0] sm:$0xff]
  %v21 = vld [vmem:[%s0 + $0x8] sm:$0xff]
  %v22 = vld [vmem:[%s1] sm:$0xff]
  %v23 = vld [vmem:[%s1 + $0x8] sm:$0xff]
  %v24 = vld [vmem:[%s1 + $0x10] sm:$0xff]
  %v25 = vld [vmem:[%s1 + $0x18] sm:$0xff]
  %v26 = vld [vmem:[%s2] sm:$0x1]
  %v28 = vperm.slane %v26, 0
  %vm30 = vcmask 261120
  %v32 = vsel %vm30, %v20, 0
  %v35 = vsel %vm30, %v21, 0
  %37 = vmatpush.msra.mxu0 0.0
  %38 = vmatpush.msra.mxu0 0.0
  %39 = vmatpush.msra.mxu0 0.0
  %40 = vmatpush.msra.mxu0 0.0
  %41 = vmatpush.msra.mxu0 0.0
  %42 = vmatpush.msra.mxu0 0.0
  %43 = vmatpush.msra.mxu0 0.0
  %44 = vmatpush.msra.mxu0 0.0
  %45 = vmatpush.msra.mxu0 0.0
  %46 = vmatpush.msra.mxu0 0.0
  %47 = vmatpush.msra.mxu0 0.0
  %48 = vmatpush.msra.mxu0 0.0
  %49 = vmatpush.msra.mxu0 %v25
  %50 = vmatpush.msra.mxu0 %v24
  %51 = vmatpush.msra.mxu0 %v23
  %52 = vmatpush.msra.mxu0 %v22
  %53 = vmatmul.f32.gmra.mxu0 %v32
  %v54 = vpop.f32.mrf.mxu0
  %v55 = vadd.f32 %v28, %v54
  %56 = vmatmul.f32.gmra.mxu0 %v35
  %v57 = vpop.f32.mrf.mxu0
  %v58 = vadd.f32 %v28, %v57
  %59 = vdwg.mxu0
  %v60 = vmul.f32 %v55, 0.5
  %v61 = vmul.f32 %v58, 0.5
  %v62 = vmul.f32 %v55, 0.70710677
  %v63 = vmul.f32 %v58, 0.70710677
  %v64 = vmul.f32 %v62, %v62
  %v65 = vmin.f32 16.0, %v64
  %v66 = vmul.f32 %v65, 2.1237322e-06
  %v67 = vadd.f32 %v66, 0.00028619796
  %v68 = vmul.f32 %v65, %v67
  %v69 = vadd.f32 %v68, 0.0036580483
  %v70 = vmul.f32 %v65, %v69
  %v71 = vadd.f32 %v70, 0.05243302
  %v72 = vmul.f32 %v65, %v71
  %v73 = vadd.f32 %v72, 0.18741608
  %v74 = vmul.f32 %v65, %v73
  %v75 = vadd.f32 %v74, 1.1283791
  %v76 = vmul.f32 %v62, %v75
  %v77 = vmul.f32 %v65, 3.8918573e-05
  %v78 = vadd.f32 %v77, 0.001143296
  %v79 = vmul.f32 %v65, %v78
  %v80 = vadd.f32 %v79, 0.014752088
  %v81 = vmul.f32 %v65, %v80
  %v82 = vadd.f32 %v81, 0.112945676
  %v83 = vmul.f32 %v65, %v82
  %v84 = vadd.f32 %v83, 0.4994258
  %v85 = vmul.f32 %v65, %v84
  %v86 = vadd.f32 %v85, 1.0
  %v87 = vrcp.pop %v86
  %v88 = vmul.f32 %v86, %v87
  %v89 = vsub.f32 1.0, %v88
  %v90 = vmul.f32 %v87, %v89
  %v91 = vadd.f32 %v87, %v90
  %vm92 = vweird.f32 %v86
  %vm93 = vweird.f32 %v87
  %vm94 = vmor %vm92, %vm93
  %v95 = vsel %vm94, %v87, %v91
  %v96 = vand.u32 2147483647, %v86
  %vm97 = vcmp.eq.f32.partialorder %v96, 8.507059e+37
  %v98 = vand.u32 %v86, 2147483648
  %v99 = vor.u32 1.1754944e-38, %v98
  %v100 = vsel %vm97, %v99, %v95
  %v101 = vmul.f32 %v76, %v100
  %v102 = vmin.f32 %v101, 1.0
  %v103 = vmax.f32 %v102, -1.0
  %v104 = vmul.f32 %v63, %v63
  %v105 = vmin.f32 16.0, %v104
  %v106 = vmul.f32 %v105, 2.1237322e-06
  %v107 = vadd.f32 %v106, 0.00028619796
  %v108 = vmul.f32 %v105, %v107
  %v109 = vadd.f32 %v108, 0.0036580483
  %v110 = vmul.f32 %v105, %v109
  %v111 = vadd.f32 %v110, 0.05243302
  %v112 = vmul.f32 %v105, %v111
  %v113 = vadd.f32 %v112, 0.18741608
  %v114 = vmul.f32 %v105, %v113
  %v115 = vadd.f32 %v114, 1.1283791
  %v116 = vmul.f32 %v63, %v115
  %v117 = vmul.f32 %v105, 3.8918573e-05
  %v118 = vadd.f32 %v117, 0.001143296
  %v119 = vmul.f32 %v105, %v118
  %v120 = vadd.f32 %v119, 0.014752088
  %v121 = vmul.f32 %v105, %v120
  %v122 = vadd.f32 %v121, 0.112945676
  %v123 = vmul.f32 %v105, %v122
  %v124 = vadd.f32 %v123, 0.4994258
  %v125 = vmul.f32 %v105, %v124
  %v126 = vadd.f32 %v125, 1.0
  %v127 = vrcp.pop %v126
  %v128 = vmul.f32 %v126, %v127
  %v129 = vsub.f32 1.0, %v128
  %v130 = vmul.f32 %v127, %v129
  %v131 = vadd.f32 %v127, %v130
  %vm132 = vweird.f32 %v126
  %vm133 = vweird.f32 %v127
  %vm134 = vmor %vm132, %vm133
  %v135 = vsel %vm134, %v127, %v131
  %v136 = vand.u32 2147483647, %v126
  %vm137 = vcmp.eq.f32.partialorder %v136, 8.507059e+37
  %v138 = vand.u32 %v126, 2147483648
  %v139 = vor.u32 1.1754944e-38, %v138
  %v140 = vsel %vm137, %v139, %v135
  %v141 = vmul.f32 %v116, %v140
  %v142 = vmin.f32 %v141, 1.0
  %v143 = vmax.f32 %v142, -1.0
  %v144 = vadd.f32 %v103, 1.0
  %v145 = vadd.f32 %v143, 1.0
  %v146 = vmul.f32 %v60, %v144
  %v147 = vmul.f32 %v61, %v145
  %v148 = vld [vmem:[%s3] sm:$0xff]
  %v149 = vld [vmem:[%s3 + $0x8] sm:$0xff]
  %v150 = vld [vmem:[%s3 + $0x10] sm:$0xff]
  %v151 = vld [vmem:[%s3 + $0x18] sm:$0xff]
  %v152 = vld [vmem:[%s3 + $0x20] sm:$0xff]
  %v153 = vld [vmem:[%s3 + $0x28] sm:$0xff]
  %v154 = vld [vmem:[%s3 + $0x30] sm:$0xff]
  %v155 = vld [vmem:[%s3 + $0x38] sm:$0xff]
  %v156 = vld [vmem:[%s3 + $0x40] sm:$0xff]
  %v157 = vld [vmem:[%s3 + $0x48] sm:$0xff]
  %v158 = vld [vmem:[%s3 + $0x50] sm:$0xff]
  %v159 = vld [vmem:[%s3 + $0x58] sm:$0xff]
  %v160 = vld [vmem:[%s3 + $0x60] sm:$0xff]
  %v161 = vld [vmem:[%s3 + $0x68] sm:$0xff]
  %v162 = vld [vmem:[%s3 + $0x70] sm:$0xff]
  %v163 = vld [vmem:[%s3 + $0x78] sm:$0xff]
  %v164 = vld [vmem:[%s3 + $0x80] sm:$0xff]
  %v165 = vld [vmem:[%s3 + $0x88] sm:$0xff]
  %v166 = vld [vmem:[%s3 + $0x90] sm:$0xff]
  %v167 = vld [vmem:[%s3 + $0x98] sm:$0xff]
  %v168 = vld [vmem:[%s3 + $0xa0] sm:$0xff]
  %v169 = vld [vmem:[%s3 + $0xa8] sm:$0xff]
  %v170 = vld [vmem:[%s3 + $0xb0] sm:$0xff]
  %v171 = vld [vmem:[%s3 + $0xb8] sm:$0xff]
  %v172 = vld [vmem:[%s3 + $0xc0] sm:$0xff]
  %v173 = vld [vmem:[%s3 + $0xc8] sm:$0xff]
  %v174 = vld [vmem:[%s3 + $0xd0] sm:$0xff]
  %v175 = vld [vmem:[%s3 + $0xd8] sm:$0xff]
  %v176 = vld [vmem:[%s3 + $0xe0] sm:$0xff]
  %v177 = vld [vmem:[%s3 + $0xe8] sm:$0xff]
  %v178 = vld [vmem:[%s3 + $0xf0] sm:$0xff]
  %v179 = vld [vmem:[%s3 + $0xf8] sm:$0xff]
  %v180 = vld [vmem:[%s4] sm:$0x3]
  %v182 = vperm.slane %v180, 0
  %v183 = vperm.slane %v180, 1
  %186 = vmatpush.msra.mxu0 %v178
  %187 = vmatpush.msra.mxu0 %v176
  %188 = vmatpush.msra.mxu0 %v174
  %189 = vmatpush.msra.mxu0 %v172
  %190 = vmatpush.msra.mxu0 %v170
  %191 = vmatpush.msra.mxu0 %v168
  %192 = vmatpush.msra.mxu0 %v166
  %193 = vmatpush.msra.mxu0 %v164
  %194 = vmatpush.msra.mxu0 %v162
  %195 = vmatpush.msra.mxu0 %v160
  %196 = vmatpush.msra.mxu0 %v158
  %197 = vmatpush.msra.mxu0 %v156
  %198 = vmatpush.msra.mxu0 %v154
  %199 = vmatpush.msra.mxu0 %v152
  %200 = vmatpush.msra.mxu0 %v150
  %201 = vmatpush.msra.mxu0 %v148
  %202 = vmatmul.f32.gmra.mxu0 %v146
  %v203 = vpop.f32.mrf.mxu0
  %v204 = vadd.f32 %v182, %v203
  %205 = vmatmul.f32.gmra.mxu0 %v147
  %v206 = vpop.f32.mrf.mxu0
  %v207 = vadd.f32 %v182, %v206
  %208 = vdwg.mxu0
  %209 = vmatpush.msra.mxu0 %v179
  %210 = vmatpush.msra.mxu0 %v177
  %211 = vmatpush.msra.mxu0 %v175
  %212 = vmatpush.msra.mxu0 %v173
  %213 = vmatpush.msra.mxu0 %v171
  %214 = vmatpush.msra.mxu0 %v169
  %215 = vmatpush.msra.mxu0 %v167
  %216 = vmatpush.msra.mxu0 %v165
  %217 = vmatpush.msra.mxu0 %v163
  %218 = vmatpush.msra.mxu0 %v161
  %219 = vmatpush.msra.mxu0 %v159
  %220 = vmatpush.msra.mxu0 %v157
  %221 = vmatpush.msra.mxu0 %v155
  %222 = vmatpush.msra.mxu0 %v153
  %223 = vmatpush.msra.mxu0 %v151
  %224 = vmatpush.msra.mxu0 %v149
  %225 = vmatmul.f32.gmra.mxu0 %v146
  %v226 = vpop.f32.mrf.mxu0
  %v227 = vadd.f32 %v183, %v226
  %228 = vmatmul.f32.gmra.mxu0 %v147
  %v229 = vpop.f32.mrf.mxu0
  %v230 = vadd.f32 %v183, %v229
  %231 = vdwg.mxu0
  %232 = vst [vmem:[%s5] sm:$0xff] %v204
  %233 = vst [vmem:[%s5 + $0x8] sm:$0xff] %v227
  %234 = vst [vmem:[%s5 + $0x10] sm:$0xff] %v207
  %235 = vst [vmem:[%s5 + $0x18] sm:$0xff] %v230
  // Predicated region
  $region22: #{mlp_pallas.1} parent=0 // pred_check
    _
  $region23: #{mlp_pallas.1} parent=0 // pred_check_branch
    %237 = sbr.rel (0) target = $region25
  $region24: #{mlp_pallas.1} parent=0 // pred_region
    _
  $region25: #{mlp_pallas.1} parent=0 // pred_fallthru
    _
  // Predicated region
  $region26: #{mlp_pallas.1} parent=0 // pred_check
    _
  $region27: #{mlp_pallas.1} parent=0 // pred_check_branch
    %239 = sbr.rel (0) target = $region29
  $region28: #{mlp_pallas.1} parent=0 // pred_region
    _
  $region29: #{mlp_pallas.1} parent=0 // pred_fallthru
    _

</llo_original>
